<compile_context>
chip_gen: v6e
topology: v6e:2x2x1
jax: 0.10.0
libtpu: 0.0.40
codegen_flags: <defaults>
</compile_context>

<pallas_src>
import jax
import jax.numpy as jnp
from jax.experimental import pallas as pl
from jax.experimental.pallas import tpu as pltpu

LANE = 128  # vreg lane width


def torus_sdf_kernel(center_ref, radii_ref, pts_ref, out_ref):
    # SMEM scalar params.
    cx = center_ref[0]
    cy = center_ref[1]
    cz = center_ref[2]
    R = radii_ref[0]   # major (ring) radius
    r = radii_ref[1]   # minor (tube) radius

    # pts_ref block is (3, tm, 128); each plane is a dense (tm, 128) tile.
    dx = pts_ref[0] - cx
    dy = pts_ref[1] - cy
    dz = pts_ref[2] - cz

    ring = jnp.sqrt(dx * dx + dy * dy) - R                    # EUP sqrt + VPU
    out_ref[...] = (jnp.sqrt(ring * ring + dz * dz) - r).astype(out_ref.dtype)


def _round_up(x, m):
    return ((x + m - 1) // m) * m


def _cdiv(a, b):
    return -(-a // b)


def _tiling_rows(m, tile_m):
    """Given m rows of 128 points, pick (tm, g, m_pad) for a 1-D grid."""
    m = max(m, 1)
    m8 = _round_up(m, 8)                     # sublane-aligned row count
    tm = _round_up(min(tile_m, m8), 8)
    # v7x has 2 TensorCores; make sure the "parallel" grid has >= 2 steps
    # whenever there is more than one sublane-row of work to shard.
    if m8 > 8:
        tm = min(tm, _round_up(_cdiv(m8, 2), 8))
    g = _cdiv(m8, tm)
    tm = _round_up(_cdiv(m8, g), 8)          # rebalance, keep multiple of 8
    m_pad = g * tm
    return tm, g, m_pad


def _run_planar(pts_t, center, radii, *, tm, g, out_dtype):
    """pts_t: (3, g*tm, 128) f32 SoA planes -> (g*tm, 128) sdf values."""
    assert center.size == 3, f"center must have 3 elements, got {center.shape}"
    assert radii.size == 2, f"radii must have 2 elements, got {radii.shape}"
    m_pad = g * tm
    assert pts_t.shape == (3, m_pad, LANE), pts_t.shape

    # Double-buffered footprint estimate; raise the scoped-VMEM limit only if
    # a caller requested tiles bigger than the always-safe default.
    in_block = 3 * tm * LANE * 4
    out_block = tm * LANE * jnp.dtype(out_dtype).itemsize
    vmem_needed = 2 * (in_block + out_block) + (2 << 20)
    cp = dict(dimension_semantics=("parallel",))
    if vmem_needed > (12 << 20):
        cp["vmem_limit_bytes"] = min(vmem_needed + (4 << 20), 64 << 20)

    return pl.pallas_call(
        torus_sdf_kernel,
        out_shape=jax.ShapeDtypeStruct((m_pad, LANE), out_dtype),
        grid=(g,),
        in_specs=[
            pl.BlockSpec(memory_space=pltpu.MemorySpace.SMEM),   # center (3,)
            pl.BlockSpec(memory_space=pltpu.MemorySpace.SMEM),   # radii  (2,)
            pl.BlockSpec((3, tm, LANE), lambda i: (0, i, 0)),    # points SoA
        ],
        out_specs=pl.BlockSpec((tm, LANE), lambda i: (i, 0)),
        compiler_params=pltpu.CompilerParams(**cp),
    )(center.reshape(-1).astype(jnp.float32),
      radii.reshape(-1).astype(jnp.float32),
      pts_t)


def torus_sdf_planar(pts_planar, center, radii, *, tile_m=2048,
                     out_dtype=jnp.float32):
    """Zero-relayout entry point (preferred when the producer emits SoA).

    pts_planar: (3, M, 128) float — x/y/z planes of rows-of-128 points.
    Returns (M, 128) sdf values in the same row/lane layout.
    """
    three, m, lane = pts_planar.shape
    assert three == 3 and lane == LANE, pts_planar.shape
    tm, g, m_pad = _tiling_rows(m, tile_m)
    pts_t = pts_planar.astype(jnp.float32)
    if m_pad != m:   # only pad when actually required (avoids an HBM copy)
        pts_t = jnp.pad(pts_t, ((0, 0), (0, m_pad - m), (0, 0)))
    out = _run_planar(pts_t, center, radii, tm=tm, g=g, out_dtype=out_dtype)
    return out[:m] if m_pad != m else out


def torus_sdf(points, center, radii, *, tile_m=2048, out_dtype=jnp.float32):
    """AoS entry matching the PyTorch module.

    points: any shape (..., 3); center: (1,3); radii: (1,2).
    Returns (N, 1) where N = prod(points.shape[:-1]).
    """
    pts = points.reshape(-1, 3).astype(jnp.float32)
    n = pts.shape[0]

    tm, g, m_pad = _tiling_rows(_cdiv(max(n, 1), LANE), tile_m)
    n_pad = m_pad * LANE

    # Pad only when the point count is not already tile-aligned.
    if n_pad != n:
        pts = jnp.pad(pts, ((0, n_pad - n), (0, 0)))

    # TODO(synk): this reshape+transpose is a full HBM relayout pass of the
    # input (the dominant end-to-end cost).  Prefer torus_sdf_planar() with a
    # producer that emits the (3, M, 128) SoA layout directly, or jit the
    # producer together with this op so XLA layout assignment absorbs it.
    pts_t = pts.reshape(m_pad, LANE, 3).transpose(2, 0, 1)    # (3, M_pad, 128)

    out = _run_planar(pts_t, center, radii, tm=tm, g=g, out_dtype=out_dtype)

    flat = out.reshape(-1)
    if n_pad != n:          # identity slice elided when already aligned
        flat = flat[:n]
    return flat.reshape(n, 1)


def torus_sdf_ref(points, center, radii):
    pts = points.reshape(-1, 3).astype(jnp.float32)
    diff = pts - center                               # (N, 3) - (1, 3)
    ring = jnp.linalg.norm(diff[..., :2], axis=-1) - radii[..., 0]
    q = jnp.stack([ring, diff[..., -1]], axis=-1)
    return (jnp.linalg.norm(q, axis=-1) - radii[..., 1])[..., None]


if __name__ == "__main__":
    key = jax.random.PRNGKey(0)

    # Deterministic parameters (shapes from __init__: (1,3) and (1,2)).
    center = jnp.array([[0.1, -0.2, 0.3]], dtype=jnp.float32)
    radii = jnp.array([[0.5, 0.15]], dtype=jnp.float32)

    k1, k2, k3, k4 = jax.random.split(key, 4)

    # Case 1: (2, 64, 3) -> N = 128 points (exact multiple of 128).
    points = jax.random.normal(k1, (2, 64, 3), dtype=jnp.float32)
    out = jax.block_until_ready(torus_sdf(points, center, radii))
    ref = torus_sdf_ref(points, center, radii)
    assert out.shape == (128, 1), out.shape
    assert jnp.allclose(out, ref, atol=1e-5, rtol=1e-5), float(
        jnp.max(jnp.abs(out - ref)))

    # Case 2: ragged N = 385 points (exercises padding + tail slicing).
    points2 = jax.random.normal(k2, (5, 77, 3), dtype=jnp.float32)
    out2 = jax.block_until_ready(torus_sdf(points2, center, radii))
    ref2 = torus_sdf_ref(points2, center, radii)
    assert out2.shape == (385, 1), out2.shape
    assert jnp.allclose(out2, ref2, atol=1e-5, rtol=1e-5), float(
        jnp.max(jnp.abs(out2 - ref2)))

    # Case 3: N = 40960 (tile-aligned) -> multi-step "parallel" grid (g >= 2,
    # both v7x TensorCores), and the no-pad / no-tail-slice fast path.
    points3 = jax.random.normal(k3, (40960, 3), dtype=jnp.float32)
    out3 = jax.block_until_ready(torus_sdf(points3, center, radii))
    ref3 = torus_sdf_ref(points3, center, radii)
    assert out3.shape == (40960, 1), out3.shape
    assert jnp.allclose(out3, ref3, atol=1e-5, rtol=1e-5), float(
        jnp.max(jnp.abs(out3 - ref3)))

    # Case 4: SoA producer path -> zero wrapper-side relayout.
    m_rows = 16
    pts_planar = jax.random.normal(k4, (3, m_rows, LANE), dtype=jnp.float32)
    out4 = jax.block_until_ready(torus_sdf_planar(pts_planar, center, radii))
    pts_aos = pts_planar.transpose(1, 2, 0).reshape(-1, 3)   # test-only view
    ref4 = torus_sdf_ref(pts_aos, center, radii).reshape(m_rows, LANE)
    assert out4.shape == (m_rows, LANE), out4.shape
    assert jnp.allclose(out4, ref4, atol=1e-5, rtol=1e-5), float(
        jnp.max(jnp.abs(out4 - ref4)))

    print("KERNEL_OK")
</pallas_src>

<mosaic_0001>
module attributes {stable_mosaic.version = 11 : i64} {
  func.func @torus_sdf_kernel(%arg0: i32, %arg1: memref<3xf32, #tpu.memory_space<smem>>, %arg2: memref<2xf32, #tpu.memory_space<smem>>, %arg3: memref<3x8x128xf32, #tpu.memory_space<vmem>>, %arg4: memref<8x128xf32, #tpu.memory_space<vmem>>) attributes {dimension_semantics = [#tpu.dimension_semantics<parallel>], iteration_bounds = array<i64: 1>, scalar_prefetch = 0 : i64, scratch_operands = 0 : i64, tpu.core_type = #tpu.core_type<tc>, window_params = [{transform_indices = @transform_0, window_bounds = array<i64: 3>}, {transform_indices = @transform_1, window_bounds = array<i64: 2>}, {transform_indices = @transform_2, window_bounds = array<i64: 3, 8, 128>}, {transform_indices = @transform_3, window_bounds = array<i64: 8, 128>}]} {
    %c0 = arith.constant 0 : index
    %0 = memref.load %arg1[%c0] : memref<3xf32, #tpu.memory_space<smem>>
    %c1 = arith.constant 1 : index
    %1 = memref.load %arg1[%c1] : memref<3xf32, #tpu.memory_space<smem>>
    %c2 = arith.constant 2 : index
    %2 = memref.load %arg1[%c2] : memref<3xf32, #tpu.memory_space<smem>>
    %c0_0 = arith.constant 0 : index
    %3 = memref.load %arg2[%c0_0] : memref<2xf32, #tpu.memory_space<smem>>
    %c1_1 = arith.constant 1 : index
    %4 = memref.load %arg2[%c1_1] : memref<2xf32, #tpu.memory_space<smem>>
    %c0_2 = arith.constant 0 : index
    %c0_3 = arith.constant 0 : index
    %c0_4 = arith.constant 0 : index
    %5 = vector.load %arg3[%c0_2, %c0_3, %c0_4] : memref<3x8x128xf32, #tpu.memory_space<vmem>>, vector<1x8x128xf32>
    %6 = vector.shape_cast %5 : vector<1x8x128xf32> to vector<8x128xf32>
    %7 = vector.broadcast %0 : f32 to vector<8x128xf32>
    %8 = arith.subf %6, %7 : vector<8x128xf32>
    %c1_5 = arith.constant 1 : index
    %c0_6 = arith.constant 0 : index
    %c0_7 = arith.constant 0 : index
    %9 = vector.load %arg3[%c1_5, %c0_6, %c0_7] : memref<3x8x128xf32, #tpu.memory_space<vmem>>, vector<1x8x128xf32>
    %10 = vector.shape_cast %9 : vector<1x8x128xf32> to vector<8x128xf32>
    %11 = vector.broadcast %1 : f32 to vector<8x128xf32>
    %12 = arith.subf %10, %11 : vector<8x128xf32>
    %c2_8 = arith.constant 2 : index
    %c0_9 = arith.constant 0 : index
    %c0_10 = arith.constant 0 : index
    %13 = vector.load %arg3[%c2_8, %c0_9, %c0_10] : memref<3x8x128xf32, #tpu.memory_space<vmem>>, vector<1x8x128xf32>
    %14 = vector.shape_cast %13 : vector<1x8x128xf32> to vector<8x128xf32>
    %15 = vector.broadcast %2 : f32 to vector<8x128xf32>
    %16 = arith.subf %14, %15 : vector<8x128xf32>
    %17 = arith.mulf %8, %8 : vector<8x128xf32>
    %18 = arith.mulf %12, %12 : vector<8x128xf32>
    %19 = arith.addf %17, %18 : vector<8x128xf32>
    %20 = math.sqrt %19 : vector<8x128xf32>
    %21 = vector.broadcast %3 : f32 to vector<8x128xf32>
    %22 = arith.subf %20, %21 : vector<8x128xf32>
    %23 = arith.mulf %22, %22 : vector<8x128xf32>
    %24 = arith.mulf %16, %16 : vector<8x128xf32>
    %25 = arith.addf %23, %24 : vector<8x128xf32>
    %26 = math.sqrt %25 : vector<8x128xf32>
    %27 = vector.broadcast %4 : f32 to vector<8x128xf32>
    %28 = arith.subf %26, %27 : vector<8x128xf32>
    %c0_11 = arith.constant 0 : index
    %c0_12 = arith.constant 0 : index
    %29 = vector.load %arg4[%c0_11, %c0_12] : memref<8x128xf32, #tpu.memory_space<vmem>>, vector<8x128xf32>
    tpu.vector_store %arg4[%c0_11, %c0_12], %28 {strides = array<i32>} : memref<8x128xf32, #tpu.memory_space<vmem>>, vector<8x128xf32>,
    return
  }
  func.func @transform_0(%arg0: i32) -> i32 {
    %c0_i32 = arith.constant 0 : i32
    %c0_i32_0 = arith.constant 0 : i32
    return %c0_i32 : i32
  }
  func.func @transform_1(%arg0: i32) -> i32 {
    %c0_i32 = arith.constant 0 : i32
    %c0_i32_0 = arith.constant 0 : i32
    return %c0_i32 : i32
  }
  func.func @transform_2(%arg0: i32) -> (i32, i32, i32) {
    %c0_i32 = arith.constant 0 : i32
    %c0_i32_0 = arith.constant 0 : i32
    %c0_i32_1 = arith.constant 0 : i32
    return %c0_i32, %arg0, %c0_i32_0 : i32, i32, i32
  }
  func.func @transform_3(%arg0: i32) -> (i32, i32) {
    %c0_i32 = arith.constant 0 : i32
    %c0_i32_0 = arith.constant 0 : i32
    return %arg0, %c0_i32 : i32, i32
  }
}

</mosaic_0001>

<llo_original>
// kernel: tpu_custom_call.1
$region0: #{tpu_custom_call.1}
  #allocation0 [shape = 'u32[]', space=smem, size = 0x4, offset = 0x4, fixed_abs, tag = 'smem constant byte address 0x4 - core index']
  #allocation1 [shape = 'u32[144,128]{1,0:T(1,128)}', space=vmem, size = 0x12000, scoped, tag = 'internal scratch']
  %s0 = inlined_call_operand.hbm [shape: f32[3], index: 0, kind: input, shape index: {}]
  %s1 = inlined_call_operand.vmem [shape: f32[2], index: 1, kind: input, shape index: {}]
  %s2 = inlined_call_operand.hbm [shape: f32[3,8,128], index: 2, kind: input, shape index: {}]
  %s3 = inlined_call_operand.hbm [shape: f32[8,128], index: 3, kind: output, shape index: {}]
  %s4 = sld [smem:[#allocation0]]
  $region34: #{tpu_custom_call.1} parent=0
    _
  %s6 = ssub.s32 1, %s4
  %s7 = scalar_select 0, %s6, %s4
  $region1: #{tpu_custom_call.1} parent=0
    #allocation2 [shape = 'u8[512]{0}', space=smem, size = 0x200, scoped, tag = 'input window, operand 0, single buffered']
    #allocation3 [shape = 's32[1]{0}', space=sflag, size = 0x4, scoped, tag = 'scoped memory for tpu_custom_call.1']
    #allocation4 [shape = 's32[1]{0}', space=sflag, size = 0x4, scoped, tag = 'scoped memory for tpu_custom_call.1']
    #allocation5 [shape = 's32[1]{0}', space=sflag, size = 0x4, scoped, tag = 'scoped memory for tpu_custom_call.1']
    #allocation6 [shape = 's32[1]{0}', space=sflag, size = 0x4, scoped, tag = 'scoped memory for tpu_custom_call.1']
    #allocation7 [shape = 'u8[512]{0}', space=smem, size = 0x200, scoped, tag = 'input window, operand 1, single buffered']
    #allocation8 [shape = 'u8[12288]{0}', space=vmem, size = 0x3000, scoped, tag = 'input window, operand 2, single buffered']
    #allocation9 [shape = 'u8[4096]{0}', space=vmem, size = 0x1000, scoped, tag = 'output window, operand 0, single buffered']
    %8 = vsyncpa [#allocation5], 0
    %9 = vsyncpa [#allocation6], 0
    %10 = vsyncpa [#allocation3], 0
    %11 = vsyncpa [#allocation4], 0
    // Predicated region
    $region2: #{tpu_custom_call.1} parent=1 // pred_check
      _
    $region3: #{tpu_custom_call.1} parent=1 // pred_check_branch
      %13 = sbr.rel (0) target = $region5
    $region4: #{tpu_custom_call.1} parent=1 // pred_region
      %s15 = ssub.s32 16, 16
      %16 = vsyncadd [#allocation5], %s15
      %19 = dma.hbm_to_smem %s0, 16, [#allocation2], [#allocation5]
    $region5: #{tpu_custom_call.1} parent=1 // pred_fallthru
      _
    // Predicated region
    $region6: #{tpu_custom_call.1} parent=1 // pred_check
      _
    $region7: #{tpu_custom_call.1} parent=1 // pred_check_branch
      %21 = sbr.rel (0) target = $region9
    $region8: #{tpu_custom_call.1} parent=1 // pred_region
      %s23 = ssub.s32 16, 16
      %24 = vsyncadd [#allocation6], %s23
      %s26 = sshll.u32 %s1, 4
      %s27 = int_to_ptr.vmem [resolvable:$true] %s26
      %29 = dma.vmem_to_smem %s27, 16, [#allocation7], [#allocation6]
    $region9: #{tpu_custom_call.1} parent=1 // pred_fallthru
      _
    // Predicated region
    $region10: #{tpu_custom_call.1} parent=1 // pred_check
      _
    $region11: #{tpu_custom_call.1} parent=1 // pred_check_branch
      %31 = sbr.rel (0) target = $region13
    $region12: #{tpu_custom_call.1} parent=1 // pred_region
      %s33 = ssub.s32 384, 384
      %34 = vsyncadd [#allocation3], %s33
      %s35 = sshll.u32 [#allocation8], 4
      %s36 = int_to_ptr.vmem [resolvable:$true] %s35
      %41 = dma.hbm_to_vmem [thread:$0]  %s2, 384, %s36, [#allocation3], 128, 128, 8
    $region13: #{tpu_custom_call.1} parent=1 // pred_fallthru
      _
    // Predicated region
    $region14: #{tpu_custom_call.1} parent=1 // pred_check
      _
    $region15: #{tpu_custom_call.1} parent=1 // pred_check_branch
      %43 = sbr.rel (0) target = $region17
    $region16: #{tpu_custom_call.1} parent=1 // pred_region
      %44 = dma.done [#allocation5], 16
    $region17: #{tpu_custom_call.1} parent=1 // pred_fallthru
      _
    // Predicated region
    $region18: #{tpu_custom_call.1} parent=1 // pred_check
      _
    $region19: #{tpu_custom_call.1} parent=1 // pred_check_branch
      %46 = sbr.rel (0) target = $region21
    $region20: #{tpu_custom_call.1} parent=1 // pred_region
      %47 = dma.done [#allocation6], 16
    $region21: #{tpu_custom_call.1} parent=1 // pred_fallthru
      _
    // Predicated region
    $region22: #{tpu_custom_call.1} parent=1 // pred_check
      _
    $region23: #{tpu_custom_call.1} parent=1 // pred_check_branch
      %49 = sbr.rel (0) target = $region25
    $region24: #{tpu_custom_call.1} parent=1 // pred_region
      %50 = dma.done [#allocation3], 384
    $region25: #{tpu_custom_call.1} parent=1 // pred_fallthru
      _
    %51 = sfence
    %s52 = sld [smem:[#allocation2]]
    %s53 = sld [smem:[#allocation2 + $0x1]]
    %s54 = sld [smem:[#allocation2 + $0x2]]
    %s55 = sld [smem:[#allocation7]]
    %s56 = sld [smem:[#allocation7 + $0x1]]
    %v57 = vld [vmem:[#allocation8] sm:$0xff]
    %v58 = vstv %s52
    %v59 = vsub.f32 %v57, %v58
    %s60 = scalar_lea.vmem [#allocation8], 8
    %v61 = vld [vmem:[%s60] sm:$0xff]
    %v62 = vstv %s53
    %v63 = vsub.f32 %v61, %v62
    %s64 = scalar_lea.vmem [#allocation8], 16
    %v65 = vld [vmem:[%s64] sm:$0xff]
    %v66 = vstv %s54
    %v67 = vsub.f32 %v65, %v66
    %v68 = vmul.f32 %v59, %v59
    %v69 = vmul.f32 %v63, %v63
    %v70 = vadd.f32 %v68, %v69
    %v71 = vrsqrt.pop %v70
    %v72 = vmul.f32 %v70, %v71
    %vm73 = vcmp.eq.f32.partialorder %v70, inf
    %v74 = vsel %vm73, %v70, %v72
    %vm75 = vcmp.eq.f32.partialorder %v70, 0.0
    %v76 = vand.u32 %v70, 2147483648
    %v77 = vsel %vm75, %v76, %v74
    %v78 = vstv %s55
    %v79 = vsub.f32 %v77, %v78
    %v80 = vmul.f32 %v79, %v79
    %v81 = vmul.f32 %v67, %v67
    %v82 = vadd.f32 %v80, %v81
    %v83 = vrsqrt.pop %v82
    %v84 = vmul.f32 %v82, %v83
    %vm85 = vcmp.eq.f32.partialorder %v82, inf
    %v86 = vsel %vm85, %v82, %v84
    %vm87 = vcmp.eq.f32.partialorder %v82, 0.0
    %v88 = vand.u32 %v82, 2147483648
    %v89 = vsel %vm87, %v88, %v86
    %v90 = vstv %s56
    %v91 = vsub.f32 %v89, %v90
    %92 = vst [vmem:[#allocation9] sm:$0xff] %v91
    // Predicated region
    $region26: #{tpu_custom_call.1} parent=1 // pred_check
      _
    $region27: #{tpu_custom_call.1} parent=1 // pred_check_branch
      %94 = sbr.rel (0) target = $region29
    $region28: #{tpu_custom_call.1} parent=1 // pred_region
      %s96 = ssub.s32 128, 128
      %97 = vsyncadd [#allocation4], %s96
      %s99 = sshll.u32 [#allocation9], 4
      %s100 = int_to_ptr.vmem [resolvable:$true] %s99
      %102 = dma.vmem_to_hbm [thread:$0]  %s100, 128, %s3, [#allocation4]
    $region29: #{tpu_custom_call.1} parent=1 // pred_fallthru
      _
    // Predicated region
    $region30: #{tpu_custom_call.1} parent=1 // pred_check
      _
    $region31: #{tpu_custom_call.1} parent=1 // pred_check_branch
      %104 = sbr.rel (0) target = $region33
    $region32: #{tpu_custom_call.1} parent=1 // pred_region
      %105 = dma.done [#allocation4], 128
    $region33: #{tpu_custom_call.1} parent=1 // pred_fallthru
      _
    %106 = vsyncpa [#allocation3], 1
    %107 = vsyncpa [#allocation4], 1
    %108 = vsyncpa [#allocation5], 1
    %109 = vsyncpa [#allocation6], 1

</llo_original>
